<compile_context>
chip_gen: v7x
topology: tpu7x:2x2x1
jax: 0.10.0
libtpu: 0.0.40
codegen_flags: <defaults>
</compile_context>

<pallas_src>
import functools

import jax
import jax.numpy as jnp
from jax.experimental import pallas as pl
from jax.experimental.pallas import tpu as pltpu


def _au_kernel(w_ref, gate_ref, signal_ref, out_ref):
    # w_ref:      SMEM (num_masks, Cin)   -- tiny 1x1-conv weight, read as scalars
    # gate_ref:   VMEM (1, Cin,  T_hw)    -- all gate channels for this spatial tile
    # signal_ref: VMEM (1, Csig, T_hw)
    # out_ref:    VMEM (1, Csig, T_hw)
    gate = gate_ref[0].astype(jnp.float32)      # (Cin, T)
    sig = signal_ref[0].astype(jnp.float32)     # (Csig, T)

    cin = gate.shape[0]
    num_masks = w_ref.shape[0]

    # 1x1 conv over the channel dim as an unrolled VPU FMA (K is tiny; MXU is
    # pure overhead for K=4, N=1 on a memory-bound op).
    masks = []
    for m in range(num_masks):
        acc = gate[0:1, :] * w_ref[m, 0]
        for c in range(1, cin):
            acc = acc + gate[c:c + 1, :] * w_ref[m, c]
        masks.append(jax.nn.sigmoid(acc))                 # (1, T)
    attn = masks[0] if num_masks == 1 else jnp.concatenate(masks, axis=0)

    # Broadcast over signal channels (sublane broadcast when num_masks == 1).
    out_ref[0] = (sig * (1.0 + attn)).astype(out_ref.dtype)


def _pick_spatial_tile(hw):
    # Largest lane-dense tile that divides H*W; otherwise take the full extent
    # (full-dim blocks are always legal, avoids any jnp.pad HBM pass).
    for cand in (2048, 1024, 512, 256, 128):
        if hw % cand == 0:
            return cand
    return hw


@jax.jit
def au_forward(signal, gate, weight):
    """signal: (N, Csig, H, W), gate: (N, Cin, H, W), weight: (num_masks, Cin).

    Returns (N, Csig, H, W) = signal * (1 + sigmoid(conv1x1(gate; weight))).
    """
    n, c_sig, h, w = signal.shape
    _, c_in, _, _ = gate.shape
    num_masks = weight.shape[0]
    # Same broadcast rule as PyTorch: attn (N, num_masks, H, W) vs signal.
    assert num_masks == 1 or num_masks == c_sig, (
        "num_masks must be 1 or equal to signal channels")

    hw = h * w
    t_hw = _pick_spatial_tile(hw)

    # Free views (no transpose, no pad): NCHW -> (N, C, H*W).
    gate3 = gate.reshape(n, c_in, hw)
    sig3 = signal.reshape(n, c_sig, hw)

    grid = (n, hw // t_hw)

    out3 = pl.pallas_call(
        _au_kernel,
        out_shape=jax.ShapeDtypeStruct((n, c_sig, hw), signal.dtype),
        grid_spec=pltpu.PrefetchScalarGridSpec(
            num_scalar_prefetch=0,
            grid=grid,
            in_specs=[
                # Tiny weight lives in SMEM; read as scalars inside the kernel.
                pl.BlockSpec(memory_space=pltpu.MemorySpace.SMEM),
                pl.BlockSpec((1, c_in, t_hw), lambda b, t: (b, 0, t)),
                pl.BlockSpec((1, c_sig, t_hw), lambda b, t: (b, 0, t)),
            ],
            out_specs=pl.BlockSpec((1, c_sig, t_hw), lambda b, t: (b, 0, t)),
        ),
        compiler_params=pltpu.CompilerParams(
            dimension_semantics=("parallel", "parallel")),
    )(weight, gate3, sig3)

    return out3.reshape(n, c_sig, h, w)


def au_reference(signal, gate, weight):
    # Pure-JAX reference of the PyTorch forward.
    attn = jnp.einsum("nchw,kc->nkhw", gate, weight)
    attn = jax.nn.sigmoid(attn)
    return signal * (1.0 + attn)


if __name__ == "__main__":
    key = jax.random.PRNGKey(0)
    k_sig, k_gate, k_w = jax.random.split(key, 3)

    N, C_IN, H, W = 2, 4, 16, 16      # gate:   (N, in_dims, H, W)
    C_SIG = 4                         # signal: (N, C_SIG, H, W)
    NUM_MASKS = 1                     # module default num_masks=1

    signal = jax.random.normal(k_sig, (N, C_SIG, H, W), dtype=jnp.float32)
    gate = jax.random.normal(k_gate, (N, C_IN, H, W), dtype=jnp.float32)
    # Conv2d(in_dims, num_masks, 1, bias=False) weight:
    # PyTorch shape (num_masks, in_dims, 1, 1) -> (num_masks, in_dims)
    bound = 1.0 / (C_IN ** 0.5)
    weight = jax.random.uniform(k_w, (NUM_MASKS, C_IN), dtype=jnp.float32,
                                minval=-bound, maxval=bound)

    out = au_forward(signal, gate, weight)
    out = jax.block_until_ready(out)

    ref = au_reference(signal, gate, weight)
    assert out.shape == signal.shape
    assert jnp.allclose(out, ref, atol=1e-5, rtol=1e-5), "mismatch vs reference"

    print("KERNEL_OK")
</pallas_src>

<mosaic_0001>
module attributes {stable_mosaic.version = 11 : i64} {
  func.func @_au_kernel(%arg0: i32, %arg1: i32, %arg2: memref<1x4xf32, #tpu.memory_space<smem>>, %arg3: memref<1x4x256xf32, #tpu.memory_space<vmem>>, %arg4: memref<1x4x256xf32, #tpu.memory_space<vmem>>, %arg5: memref<1x4x256xf32, #tpu.memory_space<vmem>>) attributes {dimension_semantics = [#tpu.dimension_semantics<parallel>, #tpu.dimension_semantics<parallel>], iteration_bounds = array<i64: 2, 1>, scalar_prefetch = 0 : i64, scratch_operands = 0 : i64, tpu.core_type = #tpu.core_type<tc>, window_params = [{transform_indices = @transform_0, window_bounds = array<i64: 1, 4>}, {transform_indices = @transform_1, window_bounds = array<i64: 1, 4, 256>}, {transform_indices = @transform_2, window_bounds = array<i64: 1, 4, 256>}, {transform_indices = @transform_3, window_bounds = array<i64: 1, 4, 256>}]} {
    %c0 = arith.constant 0 : index
    %c0_0 = arith.constant 0 : index
    %c0_1 = arith.constant 0 : index
    %0 = vector.load %arg3[%c0, %c0_0, %c0_1] : memref<1x4x256xf32, #tpu.memory_space<vmem>>, vector<1x4x256xf32>
    %1 = vector.shape_cast %0 : vector<1x4x256xf32> to vector<4x256xf32>
    %c0_2 = arith.constant 0 : index
    %c0_3 = arith.constant 0 : index
    %c0_4 = arith.constant 0 : index
    %2 = vector.load %arg4[%c0_2, %c0_3, %c0_4] : memref<1x4x256xf32, #tpu.memory_space<vmem>>, vector<1x4x256xf32>
    %3 = vector.shape_cast %2 : vector<1x4x256xf32> to vector<4x256xf32>
    %4 = vector.extract_strided_slice %1 {offsets = [0, 0], sizes = [1, 256], strides = [1, 1]} : vector<4x256xf32> to vector<1x256xf32>
    %c0_5 = arith.constant 0 : index
    %c0_6 = arith.constant 0 : index
    %5 = memref.load %arg2[%c0_5, %c0_6] : memref<1x4xf32, #tpu.memory_space<smem>>
    %6 = vector.broadcast %5 : f32 to vector<1x256xf32>
    %7 = arith.mulf %4, %6 : vector<1x256xf32>
    %8 = vector.extract_strided_slice %1 {offsets = [1, 0], sizes = [1, 256], strides = [1, 1]} : vector<4x256xf32> to vector<1x256xf32>
    %c0_7 = arith.constant 0 : index
    %c1 = arith.constant 1 : index
    %9 = memref.load %arg2[%c0_7, %c1] : memref<1x4xf32, #tpu.memory_space<smem>>
    %10 = vector.broadcast %9 : f32 to vector<1x256xf32>
    %11 = arith.mulf %8, %10 : vector<1x256xf32>
    %12 = arith.addf %7, %11 : vector<1x256xf32>
    %13 = vector.extract_strided_slice %1 {offsets = [2, 0], sizes = [1, 256], strides = [1, 1]} : vector<4x256xf32> to vector<1x256xf32>
    %c0_8 = arith.constant 0 : index
    %c2 = arith.constant 2 : index
    %14 = memref.load %arg2[%c0_8, %c2] : memref<1x4xf32, #tpu.memory_space<smem>>
    %15 = vector.broadcast %14 : f32 to vector<1x256xf32>
    %16 = arith.mulf %13, %15 : vector<1x256xf32>
    %17 = arith.addf %12, %16 : vector<1x256xf32>
    %18 = vector.extract_strided_slice %1 {offsets = [3, 0], sizes = [1, 256], strides = [1, 1]} : vector<4x256xf32> to vector<1x256xf32>
    %c0_9 = arith.constant 0 : index
    %c3 = arith.constant 3 : index
    %19 = memref.load %arg2[%c0_9, %c3] : memref<1x4xf32, #tpu.memory_space<smem>>
    %20 = vector.broadcast %19 : f32 to vector<1x256xf32>
    %21 = arith.mulf %18, %20 : vector<1x256xf32>
    %22 = arith.addf %17, %21 : vector<1x256xf32>
    %23 = arith.negf %22 : vector<1x256xf32>
    %24 = math.exp %23 : vector<1x256xf32>
    %cst = arith.constant 1.000000e+00 : f32
    %25 = vector.broadcast %cst : f32 to vector<1x256xf32>
    %26 = arith.addf %25, %24 : vector<1x256xf32>
    %27 = arith.divf %25, %26 : vector<1x256xf32>
    %cst_10 = arith.constant 1.000000e+00 : f32
    %28 = vector.broadcast %cst_10 : f32 to vector<1x256xf32>
    %29 = arith.addf %28, %27 : vector<1x256xf32>
    %30 = vector.broadcast %29 : vector<1x256xf32> to vector<4x256xf32>
    %31 = arith.mulf %3, %30 : vector<4x256xf32>
    %c0_11 = arith.constant 0 : index
    %c0_12 = arith.constant 0 : index
    %c0_13 = arith.constant 0 : index
    %32 = vector.load %arg5[%c0_11, %c0_12, %c0_13] : memref<1x4x256xf32, #tpu.memory_space<vmem>>, vector<1x4x256xf32>
    %33 = vector.shape_cast %32 : vector<1x4x256xf32> to vector<4x256xf32>
    %34 = vector.shape_cast %31 : vector<4x256xf32> to vector<1x4x256xf32>
    tpu.vector_store %arg5[%c0_11, %c0_12, %c0_13], %34 {strides = array<i32>} : memref<1x4x256xf32, #tpu.memory_space<vmem>>, vector<1x4x256xf32>,
    return
  }
  func.func @transform_0(%arg0: i32, %arg1: i32) -> (i32, i32) {
    %c0_i32 = arith.constant 0 : i32
    %c0_i32_0 = arith.constant 0 : i32
    %c0_i32_1 = arith.constant 0 : i32
    return %c0_i32, %c0_i32_0 : i32, i32
  }
  func.func @transform_1(%arg0: i32, %arg1: i32) -> (i32, i32, i32) {
    %c0_i32 = arith.constant 0 : i32
    %c0_i32_0 = arith.constant 0 : i32
    return %arg0, %c0_i32, %arg1 : i32, i32, i32
  }
  func.func @transform_2(%arg0: i32, %arg1: i32) -> (i32, i32, i32) {
    %c0_i32 = arith.constant 0 : i32
    %c0_i32_0 = arith.constant 0 : i32
    return %arg0, %c0_i32, %arg1 : i32, i32, i32
  }
  func.func @transform_3(%arg0: i32, %arg1: i32) -> (i32, i32, i32) {
    %c0_i32 = arith.constant 0 : i32
    %c0_i32_0 = arith.constant 0 : i32
    return %arg0, %c0_i32, %arg1 : i32, i32, i32
  }
}

</mosaic_0001>

<llo_original>
// kernel: au_forward.1
$region0: #{au_forward.1}
  #allocation0 [shape = 'u32[]', space=smem, size = 0x4, offset = 0x4, fixed_abs, tag = 'smem constant byte address 0x4 - core index']
  #allocation1 [shape = 'u32[144,128]{1,0:T(1,128)}', space=vmem, size = 0x12000, scoped, tag = 'internal scratch']
  %s0 = inlined_call_operand.vmem [shape: f32[1,4], index: 0, kind: input, shape index: {}]
  %s1 = inlined_call_operand.vmem [shape: f32[2,4,256], index: 1, kind: input, shape index: {}]
  %s2 = inlined_call_operand.vmem [shape: f32[2,4,256], index: 2, kind: input, shape index: {}]
  %s3 = inlined_call_operand.vmem [shape: f32[2,4,256], index: 3, kind: output, shape index: {}]
  %s4 = sld [smem:[#allocation0]]
  $region49: #{au_forward.1} parent=0
    _
  %s6 = ssub.s32 1, %s4
  %s7 = scalar_select 0, %s6, %s4
  $region1: #{au_forward.1} parent=0
    #allocation2 [shape = 'u8[512]{0}', space=smem, size = 0x200, scoped, tag = 'input window, operand 0, single buffered']
    #allocation3 [shape = 's32[2]{0}', space=sflag, size = 0x8, scoped, tag = 'scoped memory for au_forward.1']
    %8 = vsyncpa [#allocation3], 0
    loop: start=0, step=1, limit=4
    $region2: #{au_forward.1} parent=1 // loop_pre_header
      _
    $region3: #{au_forward.1} parent=1 // loop_header
      %s10 = sphi 0, %s14
      %p11 = scmp.ge.s32.totalorder %s10, 4
      %s17 = sphi 0, %s29
      %s18 = sphi 0, %s25
      %s19 = sphi 0, %s17
      %s20 = sphi 0, %s18
      %s21 = sphi 0, %s19
      %s22 = sphi 0, %s20
      %s30 = sphi 0, %s30
      %s32 = sphi 0, %s30
      %s33 = sphi 0, %s32
      %s47 = sphi 0, %s33
      %s55 = sphi 0, %s57
      %s58 = sphi 0, %s55
      %s59 = sphi 0, %s58
      %s75 = sphi 0, %s59
      %s83 = sphi 0, %s85
      %s86 = sphi 0, %s83
      %s87 = sphi 0, %s86
      %s103 = sphi 0, %s87
      %s111 = sphi 0, %s113
      %s114 = sphi 0, %s111
      %s115 = sphi 0, %s114
      %s131 = sphi 0, %s115
    $region4: #{au_forward.1} parent=1 // loop_header_branch
      %13 = sbr.rel (%p11) target = $region8
    $region5: #{au_forward.1} parent=1 // loop_body
      %s15 = ssub.s32 %s10, 1
      %s16 = ssub.s32 %s10, 2
      %s23 = sadd.s32 1, %s18
      %p24 = scmp.ge.s32.totalorder %s23, 1
      %s25 = scalar_select %p24, 0, %s23
      %s26 = sadd.s32 1, %s17
      %s27 = scalar_select %p24, %s26, %s17
      %p28 = scmp.ge.s32.totalorder %s27, 2
      %s29 = scalar_select %p28, 0, %s27
      %s31 = sadd.s32 %s30, 1
      %p34 = scmp.eq.s32.totalorder %s10, 1
      %p35 = scmp.ne.s32.totalorder %s30, %s32
      %p36 = scmp.eq.s32.totalorder %s10, 0
      %p37 = por %p35, %p36
      %p38 = scmp.ne.s32.totalorder %s30, %s32
      %p39 = scmp.eq.s32.totalorder %s15, 1
      %p40 = por %p38, %p39
      %p41 = scmp.ne.s32.totalorder %s32, %s33
      %p42 = scmp.eq.s32.totalorder %s15, 0
      %p43 = por %p41, %p42
      %p44 = scmp.ne.s32.totalorder %s32, %s33
      %p45 = scmp.eq.s32.totalorder %s16, 1
      %p46 = por %p44, %p45
      %p48 = scmp.ne.s32.totalorder %s33, %s47
      %p49 = scmp.eq.s32.totalorder %s16, 0
      %p50 = por %p48, %p49
      %s51 = ssub.s32 %s17, %s29
      %s52 = ssub.s32 %s18, %s25
      %s53 = sor.u32 %s51, %s52
      %p54 = scmp.eq.s32.totalorder %s53, 0
      %s56 = sadd.s32 %s55, 1
      %s57 = scalar_select %p54, %s55, %s56
      %p60 = pneg %p54
      %p61 = scmp.eq.s32.totalorder %s10, 1
      %p62 = por %p60, %p61
      %p63 = scmp.ne.s32.totalorder %s55, %s58
      %p64 = scmp.eq.s32.totalorder %s10, 0
      %p65 = por %p63, %p64
      %p66 = scmp.ne.s32.totalorder %s55, %s58
      %p67 = scmp.eq.s32.totalorder %s15, 1
      %p68 = por %p66, %p67
      %p69 = scmp.ne.s32.totalorder %s58, %s59
      %p70 = scmp.eq.s32.totalorder %s15, 0
      %p71 = por %p69, %p70
      %p72 = scmp.ne.s32.totalorder %s58, %s59
      %p73 = scmp.eq.s32.totalorder %s16, 1
      %p74 = por %p72, %p73
      %p76 = scmp.ne.s32.totalorder %s59, %s75
      %p77 = scmp.eq.s32.totalorder %s16, 0
      %p78 = por %p76, %p77
      %s79 = ssub.s32 %s17, %s29
      %s80 = ssub.s32 %s18, %s25
      %s81 = sor.u32 %s79, %s80
      %p82 = scmp.eq.s32.totalorder %s81, 0
      %s84 = sadd.s32 %s83, 1
      %s85 = scalar_select %p82, %s83, %s84
      %p88 = pneg %p82
      %p89 = scmp.eq.s32.totalorder %s10, 1
      %p90 = por %p88, %p89
      %p91 = scmp.ne.s32.totalorder %s83, %s86
      %p92 = scmp.eq.s32.totalorder %s10, 0
      %p93 = por %p91, %p92
      %p94 = scmp.ne.s32.totalorder %s83, %s86
      %p95 = scmp.eq.s32.totalorder %s15, 1
      %p96 = por %p94, %p95
      %p97 = scmp.ne.s32.totalorder %s86, %s87
      %p98 = scmp.eq.s32.totalorder %s15, 0
      %p99 = por %p97, %p98
      %p100 = scmp.ne.s32.totalorder %s86, %s87
      %p101 = scmp.eq.s32.totalorder %s16, 1
      %p102 = por %p100, %p101
      %p104 = scmp.ne.s32.totalorder %s87, %s103
      %p105 = scmp.eq.s32.totalorder %s16, 0
      %p106 = por %p104, %p105
      %s107 = ssub.s32 %s17, %s29
      %s108 = ssub.s32 %s18, %s25
      %s109 = sor.u32 %s107, %s108
      %p110 = scmp.eq.s32.totalorder %s109, 0
      %s112 = sadd.s32 %s111, 1
      %s113 = scalar_select %p110, %s111, %s112
      %p116 = pneg %p110
      %p117 = scmp.eq.s32.totalorder %s10, 1
      %p118 = por %p116, %p117
      %p119 = scmp.ne.s32.totalorder %s111, %s114
      %p120 = scmp.eq.s32.totalorder %s10, 0
      %p121 = por %p119, %p120
      %p122 = scmp.ne.s32.totalorder %s111, %s114
      %p123 = scmp.eq.s32.totalorder %s15, 1
      %p124 = por %p122, %p123
      %p125 = scmp.ne.s32.totalorder %s114, %s115
      %p126 = scmp.eq.s32.totalorder %s15, 0
      %p127 = por %p125, %p126
      %p128 = scmp.ne.s32.totalorder %s114, %s115
      %p129 = scmp.eq.s32.totalorder %s16, 1
      %p130 = por %p128, %p129
      %p132 = scmp.ne.s32.totalorder %s115, %s131
      %p133 = scmp.eq.s32.totalorder %s16, 0
      %p134 = por %p132, %p133
      %p135 = scmp.le.s32.totalorder 1, %s10
      %p136 = scmp.lt.s32.totalorder %s10, 3
      %p137 = pnand %p135, %p136
      %p138 = pneg %p137
      // Predicated region
      $region9: #{au_forward.1} parent=5 // pred_check
        _
      $region10: #{au_forward.1} parent=5 // pred_check_branch
        %140 = sbr.rel (%p137) target = $region12
      $region11: #{au_forward.1} parent=5 // pred_region
        %s141 = ssub.s32 %s10, 1
        // Predicated region
        $region13: #{au_forward.1} parent=11 // pred_check
          %p142 = pneg %p43
        $region14: #{au_forward.1} parent=11 // pred_check_branch
          %144 = sbr.rel (%p142) target = $region16
        $region15: #{au_forward.1} parent=11 // pred_region
          %s146 = ssub.s32 16, 16
          %147 = vsyncadd [#allocation3], %s146
          %s149 = sshll.u32 %s0, 4
          %s150 = int_to_ptr.vmem [resolvable:$true] %s149
          %152 = dma.vmem_to_smem %s150, 16, [#allocation2], [#allocation3]
        $region16: #{au_forward.1} parent=11 // pred_fallthru
          _
      $region12: #{au_forward.1} parent=5 // pred_fallthru
        _
      %p153 = scmp.lt.s32.totalorder %s10, 2
      // Predicated region
      $region17: #{au_forward.1} parent=5 // pred_check
        %p154 = pneg %p153
      $region18: #{au_forward.1} parent=5 // pred_check_branch
        %156 = sbr.rel (%p154) target = $region20
      $region19: #{au_forward.1} parent=5 // pred_region
        // Predicated region
        $region21: #{au_forward.1} parent=19 // pred_check
          %p157 = pneg %p65
        $region22: #{au_forward.1} parent=19 // pred_check_branch
          %159 = sbr.rel (%p157) target = $region24
        $region23: #{au_forward.1} parent=19 // pred_region
          %s160 = smul.u32 2, %s18
          %p161 = scmp.lt.s32.totalorder %s17, 1
          %s162 = scalar_select %p161, %s17, 1
          %p163 = scmp.lt.s32.totalorder %s160, 1
          %s164 = scalar_select %p163, %s160, 1
          %s165 = smul.addr %s162, 2
          %s166 = sadd.s32 %s164, %s165
          %s167 = smul.addr %s166, 4
          %s168 = scalar_lea.vmem %s1, %s167
          %s169 = smul.u32 2, %s18
        $region24: #{au_forward.1} parent=19 // pred_fallthru
          _
        // Predicated region
        $region25: #{au_forward.1} parent=19 // pred_check
          %p170 = pneg %p93
        $region26: #{au_forward.1} parent=19 // pred_check_branch
          %172 = sbr.rel (%p170) target = $region28
        $region27: #{au_forward.1} parent=19 // pred_region
          %s173 = smul.u32 2, %s18
          %p174 = scmp.lt.s32.totalorder %s17, 1
          %s175 = scalar_select %p174, %s17, 1
          %p176 = scmp.lt.s32.totalorder %s173, 1
          %s177 = scalar_select %p176, %s173, 1
          %s178 = smul.addr %s175, 2
          %s179 = sadd.s32 %s177, %s178
          %s180 = smul.addr %s179, 4
          %s181 = scalar_lea.vmem %s2, %s180
          %s182 = smul.u32 2, %s18
        $region28: #{au_forward.1} parent=19 // pred_fallthru
          _
      $region20: #{au_forward.1} parent=5 // pred_fallthru
        _
      %p183 = scmp.le.s32.totalorder 1, %s10
      %p184 = scmp.lt.s32.totalorder %s10, 3
      %p185 = pnand %p183, %p184
      %p186 = pneg %p185
      // Predicated region
      $region29: #{au_forward.1} parent=5 // pred_check
        _
      $region30: #{au_forward.1} parent=5 // pred_check_branch
        %188 = sbr.rel (%p185) target = $region32
      $region31: #{au_forward.1} parent=5 // pred_region
        %s189 = ssub.s32 %s10, 1
        // Predicated region
        $region33: #{au_forward.1} parent=31 // pred_check
          %p190 = pneg %p43
        $region34: #{au_forward.1} parent=31 // pred_check_branch
          %192 = sbr.rel (%p190) target = $region36
        $region35: #{au_forward.1} parent=31 // pred_region
          %193 = dma.done [#allocation3], 16
        $region36: #{au_forward.1} parent=31 // pred_fallthru
          _
        %194 = sfence
        %p195 = pneg %p43
        %p196 = pneg %p40
        %s197 = smul.u32 2, %s20
        %p198 = scmp.lt.s32.totalorder %s19, 1
        %s199 = scalar_select %p198, %s19, 1
        %p200 = scmp.lt.s32.totalorder %s197, 1
        %s201 = scalar_select %p200, %s197, 1
        %s202 = smul.addr %s199, 2
        %s203 = sadd.s32 %s201, %s202
        %s204 = smul.addr %s203, 4
        %s205 = scalar_lea.vmem %s1, %s204
        %p206 = pneg %p71
        %p207 = pneg %p68
        %s208 = smul.u32 2, %s20
        %p209 = scmp.lt.s32.totalorder %s19, 1
        %s210 = scalar_select %p209, %s19, 1
        %p211 = scmp.lt.s32.totalorder %s208, 1
        %s212 = scalar_select %p211, %s208, 1
        %s213 = smul.addr %s210, 2
        %s214 = sadd.s32 %s212, %s213
        %s215 = smul.addr %s214, 4
        %s216 = scalar_lea.vmem %s2, %s215
        %p217 = pneg %p99
        %p218 = pneg %p96
        %p219 = pneg %p127
        %p220 = pneg %p124
        %s221 = smul.u32 2, %s20
        %p222 = scmp.lt.s32.totalorder %s19, 1
        %s223 = scalar_select %p222, %s19, 1
        %p224 = scmp.lt.s32.totalorder %s221, 1
        %s225 = scalar_select %p224, %s221, 1
        %s226 = smul.addr %s223, 2
        %s227 = sadd.s32 %s225, %s226
        %s228 = smul.addr %s227, 4
        %s229 = scalar_lea.vmem %s3, %s228
        %s230 = smul.u32 2, %s20
        %p231 = scmp.lt.s32.totalorder %s19, 1
        %s232 = scalar_select %p231, %s19, 1
        %p233 = scmp.lt.s32.totalorder %s230, 1
        %s234 = scalar_select %p233, %s230, 1
        %s235 = smul.addr %s232, 2
        %s236 = sadd.s32 %s234, %s235
        %s237 = smul.addr %s236, 4
        %s238 = scalar_lea.vmem %s1, %s237
        %s239 = smul.u32 2, %s20
        %s240 = smul.u32 2, %s20
        %p241 = scmp.lt.s32.totalorder %s19, 1
        %s242 = scalar_select %p241, %s19, 1
        %p243 = scmp.lt.s32.totalorder %s240, 1
        %s244 = scalar_select %p243, %s240, 1
        %s245 = smul.addr %s242, 2
        %s246 = sadd.s32 %s244, %s245
        %s247 = smul.addr %s246, 4
        %s248 = scalar_lea.vmem %s2, %s247
        %s249 = smul.u32 2, %s20
        %s250 = smul.u32 2, %s20
        %p251 = scmp.lt.s32.totalorder %s19, 1
        %s252 = scalar_select %p251, %s19, 1
        %p253 = scmp.lt.s32.totalorder %s250, 1
        %s254 = scalar_select %p253, %s250, 1
        %s255 = smul.addr %s252, 2
        %s256 = sadd.s32 %s254, %s255
        %s257 = smul.addr %s256, 4
        %s258 = scalar_lea.vmem %s3, %s257
        %s259 = smul.u32 2, %s20
        %v260 = vld [vmem:[%s238] sm:$0xff]
        %v261 = vld [vmem:[%s248] sm:$0xff]
        %s262 = sld [smem:[#allocation2]]
        %v263 = vstv %s262
        %v264 = vmul.f32 %v260, %v263
        %s265 = sld [smem:[#allocation2 + $0x1]]
        %v266 = vstv %s265
        %v267 = vmul.f32 %v260, %v266
        %v269 = vrot.slane %v267, 5
        %v270 = vrot.slane %v269, 4
        %v272 = vadd.f32 %v264, %v270
        %s273 = sld [smem:[#allocation2 + $0x2]]
        %v274 = vstv %s273
        %v275 = vmul.f32 %v260, %v274
        %v277 = vrot.slane %v275, 6
        %v278 = vrot.slane %v277, 4
        %v280 = vadd.f32 %v272, %v278
        %s281 = sld [smem:[#allocation2 + $0x3]]
        %v282 = vstv %s281
        %v283 = vmul.f32 %v260, %v282
        %v285 = vrot.slane %v283, 7
        %v286 = vrot.slane %v285, 4
        %v288 = vadd.f32 %v280, %v286
        %v289 = vxor.u32 %v288, 2147483648
        %v290 = vmul.f32 %v289, 1.442695
        %v291 = vpow.pop %v290
        %v292 = vadd.f32 %v291, 1.0
        %v293 = vrcp.pop %v292
        %v294 = vmul.f32 1.0, %v293
        %v295 = vadd.f32 %v294, 1.0
        %v297 = vlaneseq
        %v298 = vshrl.u32 %v297, 7
        %v299 = vsub.s32 0, %v298
        %v300 = vrot.slane %v295, %v299
        %v301 = vlaneseq
        %v302 = vshrl.u32 %v301, 7
        %v303 = vsub.s32 4, %v302
        %v304 = vrot.slane %v295, %v303
        %v307 = vlaneseq
        %v308 = vshrl.u32 %v307, 7
        %v309 = vsub.s32 0, %v308
        %v310 = vrot.slane %v300, %v309
        %v311 = vlaneseq
        %v312 = vshrl.u32 %v311, 7
        %v313 = vsub.s32 0, %v312
        %v314 = vrot.slane %v304, %v313
        %v317 = vcombine.low %v310, %v314
        %v319 = vmul.f32 %v261, %v317
        %320 = vst [vmem:[%s258] sm:$0xff] %v319
        %s321 = smul.u32 2, %s20
        %p322 = scmp.lt.s32.totalorder %s19, 1
        %s323 = scalar_select %p322, %s19, 1
        %p324 = scmp.lt.s32.totalorder %s321, 1
        %s325 = scalar_select %p324, %s321, 1
        %s326 = smul.addr %s323, 2
        %s327 = sadd.s32 %s325, %s326
        %s328 = smul.addr %s327, 4
        %s329 = scalar_lea.vmem %s3, %s328
        // Predicated region
        $region37: #{au_forward.1} parent=31 // pred_check
          %p330 = pneg %p124
        $region38: #{au_forward.1} parent=31 // pred_check_branch
          %332 = sbr.rel (%p330) target = $region40
        $region39: #{au_forward.1} parent=31 // pred_region
          %s333 = smul.u32 2, %s20
        $region40: #{au_forward.1} parent=31 // pred_fallthru
          _
      $region32: #{au_forward.1} parent=5 // pred_fallthru
        _
      %p334 = scmp.le.s32.totalorder 2, %s10
      // Predicated region
      $region41: #{au_forward.1} parent=5 // pred_check
        %p335 = pneg %p334
      $region42: #{au_forward.1} parent=5 // pred_check_branch
        %337 = sbr.rel (%p335) target = $region44
      $region43: #{au_forward.1} parent=5 // pred_region
        %s338 = ssub.s32 %s10, 2
        // Predicated region
        $region45: #{au_forward.1} parent=43 // pred_check
          %p339 = pneg %p130
        $region46: #{au_forward.1} parent=43 // pred_check_branch
          %341 = sbr.rel (%p339) target = $region48
        $region47: #{au_forward.1} parent=43 // pred_region
          %s342 = smul.u32 2, %s22
          %p343 = scmp.lt.s32.totalorder %s21, 1
          %s344 = scalar_select %p343, %s21, 1
          %p345 = scmp.lt.s32.totalorder %s342, 1
          %s346 = scalar_select %p345, %s342, 1
          %s347 = smul.addr %s344, 2
          %s348 = sadd.s32 %s346, %s347
          %s349 = smul.addr %s348, 4
          %s350 = scalar_lea.vmem %s3, %s349
        $region48: #{au_forward.1} parent=43 // pred_fallthru
          _
      $region44: #{au_forward.1} parent=5 // pred_fallthru
        _
    $region6: #{au_forward.1} parent=1 // loop_footer
      %s14 = sadd.s32 1, %s10
    $region7: #{au_forward.1} parent=1 // loop_footer_branch
      %9 = sbr.rel target = $region3
    $region8: #{au_forward.1} parent=1 // loop_exit
      _
    %351 = vsyncpa [#allocation3], 1
    %s352 = scalar_lea.sflag [#allocation3], 1
    %353 = vsyncpa %s352, 1

</llo_original>
